<compile_context>
chip_gen: v7x
topology: tpu7x:2x2x1
jax: 0.10.0
libtpu: 0.0.40
codegen_flags: <defaults>
</compile_context>

<pallas_src>
import functools

import numpy as np
import jax
import jax.numpy as jnp
from jax import lax
from jax.experimental import pallas as pl
from jax.experimental.pallas import tpu as pltpu


def _round_up(n, m=128):
    return ((n + m - 1) // m) * m


def _pad2(a, rows, cols):
    r, c = a.shape
    return jnp.pad(a, ((0, rows - r), (0, cols - c)))


def _gat_kernel(pad, n_classes,
                x_ref, wtv_ref, wf_ref, bf_ref, adj_ref,
                logits_ref, loss_ref):
    x = x_ref[...]                             # (N, pad) f32, x[:, F] == 1.0
    n = x.shape[0]
    xb = x.astype(jnp.bfloat16)

    # One fused MXU pass producing [t | v]:
    #   t = x_aug @ M_aug    (M_aug = Wq_aug @ Wk_aug.T, k/q biases folded)
    #   v = x_aug @ Wv_aug   (bv folded in the augmented row)
    tv = jnp.dot(xb, wtv_ref[...], preferred_element_type=jnp.float32)
    t = tv[:, :pad]                            # (N, pad)
    v = tv[:, pad:]                            # (N, pad)

    # wei = q @ k.T == (x_aug @ M_aug) @ x_aug.T; contract last dims of both
    # operands -- no explicit transpose materialized.
    wei = lax.dot_general(t.astype(jnp.bfloat16), xb,
                          (((1,), (1,)), ((), ())),
                          preferred_element_type=jnp.float32)        # (N, N)

    # masked_fill(A_hat == 0, 0): exact multiply by the 0/1 adjacency
    # indicator (f32 VPU op; int8 mask only costs DMA bytes).
    wei = wei * adj_ref[...].astype(jnp.float32)

    h = jnp.maximum(
        jnp.dot(wei.astype(jnp.bfloat16), v.astype(jnp.bfloat16),
                preferred_element_type=jnp.float32), 0.0)            # (N, pad)

    logits = (jnp.dot(h.astype(jnp.bfloat16), wf_ref[...],
                      preferred_element_type=jnp.float32)
              + bf_ref[...])                                          # (N, pad)
    logits_ref[...] = logits.astype(logits_ref.dtype)

    # Fused cross-entropy with soft (probability) targets x_in, 'mean'.
    # The softmax is restricted to the first n_classes lanes; padded lanes
    # (including the augmented ones column of x) are excluded.
    col = lax.broadcasted_iota(jnp.int32, logits.shape, 1)
    valid = col < n_classes
    neg = jnp.where(valid, logits, -1e30)
    m = jnp.max(neg, axis=-1, keepdims=True)
    lse = jnp.log(jnp.sum(jnp.exp(neg - m), axis=-1, keepdims=True))
    log_probs = neg - m - lse
    contrib = jnp.where(valid, x * log_probs, 0.0)
    total = jnp.sum(jnp.sum(contrib, axis=1, keepdims=True),
                    axis=0, keepdims=True)                            # (1, 1)
    loss_ref[...] = -(total / n).astype(loss_ref.dtype)


def prepare_gat_params(wk, bk, wq, bq, wv, bv, wf, bf, adj):
    """One-time parameter layout/fusion (hoisted out of the jitted forward).

    Linear weights are given pre-transposed as (in, out); biases as (1, out).
    Returns fused/padded bf16 weights, f32 head bias, int8 adjacency mask.
    """
    F, E = wk.shape
    C = wf.shape[1]
    assert wv.shape == (F, F) and wf.shape[0] == F
    pad = _round_up(max(F + 1, C))             # room for the ones/bias row

    # Fold biases into an augmented row, and fold q/k into
    # M_aug = Wq_aug @ Wk_aug.T so that q @ k.T == x_aug @ M_aug @ x_aug.T.
    wq_aug = jnp.concatenate([wq, bq], axis=0)             # (F+1, E)
    wk_aug = jnp.concatenate([wk, bk], axis=0)             # (F+1, E)
    m_aug = _pad2(wq_aug @ wk_aug.T, pad, pad)             # (pad, pad)
    wv_aug = _pad2(jnp.concatenate([wv, bv], axis=0), pad, pad)
    w_tv = jnp.concatenate([m_aug, wv_aug], axis=1).astype(jnp.bfloat16)

    wf_p = _pad2(wf, pad, pad).astype(jnp.bfloat16)
    bf_p = _pad2(bf, 1, pad).astype(jnp.float32)
    adj_i8 = (adj != 0).astype(jnp.int8)
    return dict(w_tv=w_tv, wf_p=wf_p, bf_p=bf_p, adj_i8=adj_i8,
                n_features=F, n_classes=C, pad=pad)


@functools.partial(jax.jit, static_argnames=("n_features", "n_classes", "pad"))
def gat_forward(x, w_tv, wf_p, bf_p, adj_i8, *, n_features, n_classes, pad):
    """GAT forward. x: (N, F) node features. Returns (logits (N, C), loss)."""
    N, F = x.shape
    assert F == n_features
    assert n_classes == F, "cross_entropy(logits, x_in) requires C == F"

    # Augment x with a ones column at index F (applies the folded biases via
    # the MXU contraction) and zero-pad the lanes.
    x_aug = jnp.zeros((N, pad), jnp.float32)
    x_aug = x_aug.at[:, :F].set(x.astype(jnp.float32)).at[:, F].set(1.0)

    vmem = pl.BlockSpec(memory_space=pltpu.MemorySpace.VMEM)
    logits_p, loss = pl.pallas_call(
        functools.partial(_gat_kernel, pad, n_classes),
        out_shape=(jax.ShapeDtypeStruct((N, pad), jnp.float32),
                   jax.ShapeDtypeStruct((1, 1), jnp.float32)),
        in_specs=[vmem] * 5,
        out_specs=(vmem, vmem),
    )(x_aug, w_tv, wf_p, bf_p, adj_i8)

    return logits_p[:, :n_classes], loss[0, 0]


def make_a_hat(adj):
    """D^{-1/2} A D^{-1/2} with A already containing self-loops (reference)."""
    degree = jnp.sum(adj, axis=1)
    d_inv_sqrt = 1.0 / jnp.sqrt(degree)
    D = jnp.diag(d_inv_sqrt)
    return D @ adj @ D


def reference(x, wk, bk, wq, bq, wv, bv, wf, bf, a_hat):
    k = x @ wk + bk
    q = x @ wq + bq
    v = x @ wv + bv
    wei = q @ k.T
    wei = jnp.where(a_hat == 0.0, 0.0, wei)
    h = jnp.maximum(wei @ v, 0.0)
    logits = h @ wf + bf
    log_probs = jax.nn.log_softmax(logits, axis=-1)
    loss = -jnp.mean(jnp.sum(x * log_probs, axis=-1))
    return logits, loss


if __name__ == "__main__":
    # Small synthetic graph standing in for the football GML graph.
    # TODO(synk): nx.read_gml / file-based graph loading has no in-kernel
    # equivalent; a deterministic random graph is built in-script instead.
    N = 16            # number of graph nodes
    n_features = 8
    n_embd = 32
    n_classes = 8     # == n_features so cross_entropy(logits, x_in) is well-formed

    key = jax.random.PRNGKey(0)
    (k_adj, k_x, k_wk, k_bk, k_wq, k_bq,
     k_wv, k_bv, k_wf, k_bf) = jax.random.split(key, 10)

    # Deterministic directed adjacency with self-loops (make_adjacency semantics).
    adj = (jax.random.uniform(k_adj, (N, N)) < 0.25).astype(jnp.float32)
    adj = adj.at[jnp.arange(N), jnp.arange(N)].set(1.0)

    # Node features (n_features-wide, consistent with nn.Linear(n_features, ...)).
    x = jax.random.normal(k_x, (N, n_features), dtype=jnp.float32)

    # Deterministic Linear parameters, stored pre-transposed as (in, out).
    lim = 1.0 / np.sqrt(n_features)
    uni = lambda k, s: jax.random.uniform(k, s, minval=-lim, maxval=lim,
                                          dtype=jnp.float32)
    wk, bk = uni(k_wk, (n_features, n_embd)), uni(k_bk, (1, n_embd))
    wq, bq = uni(k_wq, (n_features, n_embd)), uni(k_bq, (1, n_embd))
    wv, bv = uni(k_wv, (n_features, n_features)), uni(k_bv, (1, n_features))
    wf, bf = uni(k_wf, (n_features, n_classes)), uni(k_bf, (1, n_classes))

    # One-time weight fusion / padding / casts (outside the per-call path).
    params = prepare_gat_params(wk, bk, wq, bq, wv, bv, wf, bf, adj)

    logits, loss = gat_forward(
        x, params["w_tv"], params["wf_p"], params["bf_p"], params["adj_i8"],
        n_features=params["n_features"], n_classes=params["n_classes"],
        pad=params["pad"])
    logits, loss = jax.block_until_ready((logits, loss))

    a_hat = make_a_hat(adj).astype(jnp.float32)
    ref_logits, ref_loss = reference(x, wk, bk, wq, bq, wv, bv, wf, bf, a_hat)
    # bf16 MXU operands (f32 accumulation) -> looser tolerance than the pure
    # f32 version.
    np.testing.assert_allclose(np.asarray(logits), np.asarray(ref_logits),
                               rtol=5e-2, atol=5e-2)
    np.testing.assert_allclose(np.asarray(loss), np.asarray(ref_loss),
                               rtol=5e-2, atol=5e-2)

    print("KERNEL_OK")
</pallas_src>

<mosaic_0001>
module attributes {stable_mosaic.version = 11 : i64} {
  func.func @_gat_kernel(%arg0: memref<16x128xf32, #tpu.memory_space<vmem>>, %arg1: memref<128x256xbf16, #tpu.memory_space<vmem>>, %arg2: memref<128x128xbf16, #tpu.memory_space<vmem>>, %arg3: memref<1x128xf32, #tpu.memory_space<vmem>>, %arg4: memref<16x16xi8, #tpu.memory_space<vmem>>, %arg5: memref<16x128xf32, #tpu.memory_space<vmem>>, %arg6: memref<1x1xf32, #tpu.memory_space<vmem>>) attributes {dimension_semantics = [], scalar_prefetch = 0 : i64, scratch_operands = 0 : i64, tpu.core_type = #tpu.core_type<tc>} {
    %c0 = arith.constant 0 : index
    %c0_0 = arith.constant 0 : index
    %0 = vector.load %arg0[%c0, %c0_0] : memref<16x128xf32, #tpu.memory_space<vmem>>, vector<16x128xf32>
    %1 = arith.truncf %0 : vector<16x128xf32> to vector<16x128xbf16>
    %c0_1 = arith.constant 0 : index
    %c0_2 = arith.constant 0 : index
    %2 = vector.load %arg1[%c0_1, %c0_2] : memref<128x256xbf16, #tpu.memory_space<vmem>>, vector<128x256xbf16>
    %cst = arith.constant dense<0.000000e+00> : vector<16x256xf32>
    %3 = tpu.matmul %1, %2, %cst {dimension_numbers = #tpu.dot_dimension_numbers<[1], [0], [0], [1], [0, 0, 1, 1], [], []>} : vector<16x128xbf16>, vector<128x256xbf16>, vector<16x256xf32> -> vector<16x256xf32>
    %4 = vector.extract_strided_slice %3 {offsets = [0, 0], sizes = [16, 128], strides = [1, 1]} : vector<16x256xf32> to vector<16x128xf32>
    %5 = vector.extract_strided_slice %3 {offsets = [0, 128], sizes = [16, 128], strides = [1, 1]} : vector<16x256xf32> to vector<16x128xf32>
    %6 = arith.truncf %4 : vector<16x128xf32> to vector<16x128xbf16>
    %cst_3 = arith.constant dense<0.000000e+00> : vector<16x16xf32>
    %7 = tpu.matmul %6, %1, %cst_3 {dimension_numbers = #tpu.dot_dimension_numbers<[1], [1], [0], [0], [0, 0, 1, 0], [], []>} : vector<16x128xbf16>, vector<16x128xbf16>, vector<16x16xf32> -> vector<16x16xf32>
    %c0_4 = arith.constant 0 : index
    %c0_5 = arith.constant 0 : index
    %8 = vector.load %arg4[%c0_4, %c0_5] : memref<16x16xi8, #tpu.memory_space<vmem>>, vector<16x16xi8>
    %9 = arith.sitofp %8 : vector<16x16xi8> to vector<16x16xf32>
    %10 = arith.mulf %7, %9 : vector<16x16xf32>
    %11 = arith.truncf %10 : vector<16x16xf32> to vector<16x16xbf16>
    %12 = arith.truncf %5 : vector<16x128xf32> to vector<16x128xbf16>
    %cst_6 = arith.constant dense<0.000000e+00> : vector<16x128xf32>
    %13 = tpu.matmul %11, %12, %cst_6 {dimension_numbers = #tpu.dot_dimension_numbers<[1], [0], [0], [1], [0, 0, 1, 1], [], []>} : vector<16x16xbf16>, vector<16x128xbf16>, vector<16x128xf32> -> vector<16x128xf32>
    %cst_7 = arith.constant 0.000000e+00 : f32
    %14 = vector.broadcast %cst_7 : f32 to vector<16x128xf32>
    %15 = arith.maximumf %13, %14 : vector<16x128xf32>
    %16 = arith.truncf %15 : vector<16x128xf32> to vector<16x128xbf16>
    %c0_8 = arith.constant 0 : index
    %c0_9 = arith.constant 0 : index
    %17 = vector.load %arg2[%c0_8, %c0_9] : memref<128x128xbf16, #tpu.memory_space<vmem>>, vector<128x128xbf16>
    %cst_10 = arith.constant dense<0.000000e+00> : vector<16x128xf32>
    %18 = tpu.matmul %16, %17, %cst_10 {dimension_numbers = #tpu.dot_dimension_numbers<[1], [0], [0], [1], [0, 0, 1, 1], [], []>} : vector<16x128xbf16>, vector<128x128xbf16>, vector<16x128xf32> -> vector<16x128xf32>
    %c0_11 = arith.constant 0 : index
    %c0_12 = arith.constant 0 : index
    %19 = vector.load %arg3[%c0_11, %c0_12] : memref<1x128xf32, #tpu.memory_space<vmem>>, vector<1x128xf32>
    %20 = vector.broadcast %19 : vector<1x128xf32> to vector<16x128xf32>
    %21 = arith.addf %18, %20 : vector<16x128xf32>
    %c0_13 = arith.constant 0 : index
    %c0_14 = arith.constant 0 : index
    %22 = vector.load %arg5[%c0_13, %c0_14] : memref<16x128xf32, #tpu.memory_space<vmem>>, vector<16x128xf32>
    tpu.vector_store %arg5[%c0_13, %c0_14], %21 {strides = array<i32>} : memref<16x128xf32, #tpu.memory_space<vmem>>, vector<16x128xf32>,
    %23 = tpu.iota {dimensions = array<i32: 1>} : vector<16x128xi32>
    %c8_i32 = arith.constant 8 : i32
    %24 = vector.broadcast %c8_i32 : i32 to vector<16x128xi32>
    %25 = arith.cmpi slt, %23, %24 : vector<16x128xi32>
    %cst_15 = arith.constant -1.000000e+30 : f32
    %26 = vector.broadcast %cst_15 : f32 to vector<16x128xf32>
    %27 = arith.select %25, %21, %26 : vector<16x128xi1>, vector<16x128xf32>
    %cst_16 = arith.constant dense<0xFF800000> : vector<16xf32>
    %28 = vector.multi_reduction <maximumf>, %27, %cst_16 [1] : vector<16x128xf32> to vector<16xf32>
    %29 = vector.shape_cast %28 : vector<16xf32> to vector<16x1xf32>
    %30 = vector.broadcast %29 : vector<16x1xf32> to vector<16x128xf32>
    %31 = arith.subf %27, %30 : vector<16x128xf32>
    %32 = math.exp %31 : vector<16x128xf32>
    %cst_17 = arith.constant dense<0.000000e+00> : vector<16xf32>
    %33 = vector.multi_reduction <add>, %32, %cst_17 [1] : vector<16x128xf32> to vector<16xf32>
    %34 = vector.shape_cast %33 : vector<16xf32> to vector<16x1xf32>
    %35 = math.log %34 : vector<16x1xf32>
    %36 = vector.broadcast %29 : vector<16x1xf32> to vector<16x128xf32>
    %37 = arith.subf %27, %36 : vector<16x128xf32>
    %38 = vector.broadcast %35 : vector<16x1xf32> to vector<16x128xf32>
    %39 = arith.subf %37, %38 : vector<16x128xf32>
    %40 = arith.mulf %0, %39 : vector<16x128xf32>
    %cst_18 = arith.constant 0.000000e+00 : f32
    %41 = vector.broadcast %cst_18 : f32 to vector<16x128xf32>
    %42 = arith.select %25, %40, %41 : vector<16x128xi1>, vector<16x128xf32>
    %cst_19 = arith.constant dense<0.000000e+00> : vector<16xf32>
    %43 = vector.multi_reduction <add>, %42, %cst_19 [1] : vector<16x128xf32> to vector<16xf32>
    %44 = vector.shape_cast %43 : vector<16xf32> to vector<16x1xf32>
    %cst_20 = arith.constant dense<0.000000e+00> : vector<1xf32>
    %45 = vector.multi_reduction <add>, %44, %cst_20 [0] : vector<16x1xf32> to vector<1xf32>
    %46 = vector.shape_cast %45 : vector<1xf32> to vector<1x1xf32>
    %cst_21 = arith.constant 1.600000e+01 : f32
    %47 = vector.broadcast %cst_21 : f32 to vector<1x1xf32>
    %48 = arith.divf %46, %47 : vector<1x1xf32>
    %cst_22 = arith.constant 0.000000e+00 : f32
    %49 = vector.broadcast %cst_22 : f32 to vector<1x1xf32>
    %50 = arith.subf %49, %48 : vector<1x1xf32>
    %c0_23 = arith.constant 0 : index
    %c0_24 = arith.constant 0 : index
    %51 = vector.load %arg6[%c0_23, %c0_24] : memref<1x1xf32, #tpu.memory_space<vmem>>, vector<1x1xf32>
    tpu.vector_store %arg6[%c0_23, %c0_24], %50 {strides = array<i32>} : memref<1x1xf32, #tpu.memory_space<vmem>>, vector<1x1xf32>,
    return
  }
}

</mosaic_0001>

<llo_original>
// kernel: gat_forward.1
$region0: #{gat_forward.1}
  #allocation0 [shape = 'u32[]', space=smem, size = 0x4, offset = 0x4, fixed_abs, tag = 'smem constant byte address 0x4 - core index']
  #allocation1 [shape = 'u32[144,128]{1,0:T(1,128)}', space=vmem, size = 0x12000, scoped, tag = 'internal scratch']
  %s0 = inlined_call_operand.vmem [shape: f32[16,128], index: 0, kind: input, shape index: {}]
  %s1 = inlined_call_operand.vmem [shape: bf16[128,256], index: 1, kind: input, shape index: {}]
  %s2 = inlined_call_operand.hbm [shape: bf16[128,128], index: 2, kind: input, shape index: {}]
  %s3 = inlined_call_operand.vmem [shape: f32[1,128], index: 3, kind: input, shape index: {}]
  %s4 = inlined_call_operand.vmem [shape: s8[16,16], index: 4, kind: input, shape index: {}]
  %s5 = inlined_call_operand.vmem [shape: f32[16,128], index: 5, kind: output, shape index: {0}]
  %s6 = inlined_call_operand.hbm [shape: f32[1,1], index: 6, kind: output, shape index: {1}]
  %7 = xla_tuple %s5, %s6
  %s8 = sld [smem:[#allocation0]]
  $region42: #{gat_forward.1} parent=0
    _
  %s10 = ssub.s32 1, %s8
  %s11 = scalar_select 0, %s10, %s8
  $region1: #{gat_forward.1} parent=0
    #allocation2 [shape = 'u8[32768]{0}', space=vmem, size = 0x8000, scoped, tag = 'input window, operand 2, single buffered']
    #allocation3 [shape = 's32[1]{0}', space=sflag, size = 0x4, scoped, tag = 'scoped memory for gat_forward.1']
    #allocation4 [shape = 's32[1]{0}', space=sflag, size = 0x4, scoped, tag = 'scoped memory for gat_forward.1']
    #allocation5 [shape = 'u8[512]{0}', space=vmem, size = 0x400, scoped, tag = 'output window, operand 1, single buffered']
    %12 = vsyncpa [#allocation3], 0
    %13 = vsyncpa [#allocation4], 0
    // Predicated region
    $region2: #{gat_forward.1} parent=1 // pred_check
      _
    $region3: #{gat_forward.1} parent=1 // pred_check_branch
      %15 = sbr.rel (0) target = $region5
    $region4: #{gat_forward.1} parent=1 // pred_region
      _
    $region5: #{gat_forward.1} parent=1 // pred_fallthru
      _
    // Predicated region
    $region6: #{gat_forward.1} parent=1 // pred_check
      _
    $region7: #{gat_forward.1} parent=1 // pred_check_branch
      %17 = sbr.rel (0) target = $region9
    $region8: #{gat_forward.1} parent=1 // pred_region
      _
    $region9: #{gat_forward.1} parent=1 // pred_fallthru
      _
    // Predicated region
    $region10: #{gat_forward.1} parent=1 // pred_check
      _
    $region11: #{gat_forward.1} parent=1 // pred_check_branch
      %19 = sbr.rel (0) target = $region13
    $region12: #{gat_forward.1} parent=1 // pred_region
      %s21 = ssub.s32 1024, 1024
      %22 = vsyncadd [#allocation3], %s21
      %s23 = sshll.u32 [#allocation2], 4
      %s24 = int_to_ptr.vmem [resolvable:$true] %s23
      %29 = dma.hbm_to_vmem [thread:$0]  %s2, 1024, %s24, [#allocation3], 64, 64, 4
    $region13: #{gat_forward.1} parent=1 // pred_fallthru
      _
    // Predicated region
    $region14: #{gat_forward.1} parent=1 // pred_check
      _
    $region15: #{gat_forward.1} parent=1 // pred_check_branch
      %31 = sbr.rel (0) target = $region17
    $region16: #{gat_forward.1} parent=1 // pred_region
      _
    $region17: #{gat_forward.1} parent=1 // pred_fallthru
      _
    // Predicated region
    $region18: #{gat_forward.1} parent=1 // pred_check
      _
    $region19: #{gat_forward.1} parent=1 // pred_check_branch
      %33 = sbr.rel (0) target = $region21
    $region20: #{gat_forward.1} parent=1 // pred_region
      _
    $region21: #{gat_forward.1} parent=1 // pred_fallthru
      _
    // Predicated region
    $region22: #{gat_forward.1} parent=1 // pred_check
      _
    $region23: #{gat_forward.1} parent=1 // pred_check_branch
      %35 = sbr.rel (0) target = $region25
    $region24: #{gat_forward.1} parent=1 // pred_region
      %36 = dma.done [#allocation3], 1024
    $region25: #{gat_forward.1} parent=1 // pred_fallthru
      _
    %v38 = vld [vmem:[%s0] sm:$0xff]
    %v39 = vld [vmem:[%s0 + $0x8] sm:$0xff]
    %v40 = vpack.c.bf16 %v39, %v38
    %v41 = vld [vmem:[%s1] sm:$0xff]
    %v42 = vld [vmem:[%s1 + $0x8] sm:$0xff]
    %v43 = vld [vmem:[%s1 + $0x10] sm:$0xff]
    %v44 = vld [vmem:[%s1 + $0x18] sm:$0xff]
    %v45 = vld [vmem:[%s1 + $0x20] sm:$0xff]
    %v46 = vld [vmem:[%s1 + $0x28] sm:$0xff]
    %v47 = vld [vmem:[%s1 + $0x30] sm:$0xff]
    %v48 = vld [vmem:[%s1 + $0x38] sm:$0xff]
    %v49 = vld [vmem:[%s1 + $0x40] sm:$0xff]
    %v50 = vld [vmem:[%s1 + $0x48] sm:$0xff]
    %v51 = vld [vmem:[%s1 + $0x50] sm:$0xff]
    %v52 = vld [vmem:[%s1 + $0x58] sm:$0xff]
    %v53 = vld [vmem:[%s1 + $0x60] sm:$0xff]
    %v54 = vld [vmem:[%s1 + $0x68] sm:$0xff]
    %v55 = vld [vmem:[%s1 + $0x70] sm:$0xff]
    %v56 = vld [vmem:[%s1 + $0x78] sm:$0xff]
    %v73 = vunpack.c.l.b16 %v41
    %v74 = vunpack.c.h.b16 %v41
    %v75 = vunpack.c.l.b16 %v42
    %v76 = vunpack.c.h.b16 %v42
    %v77 = vunpack.c.l.b16 %v43
    %v78 = vunpack.c.h.b16 %v43
    %v79 = vunpack.c.l.b16 %v44
    %v80 = vunpack.c.h.b16 %v44
    %v81 = vunpack.c.l.b16 %v45
    %v82 = vunpack.c.h.b16 %v45
    %v83 = vunpack.c.l.b16 %v46
    %v84 = vunpack.c.h.b16 %v46
    %v85 = vunpack.c.l.b16 %v47
    %v86 = vunpack.c.h.b16 %v47
    %v87 = vunpack.c.l.b16 %v48
    %v88 = vunpack.c.h.b16 %v48
    %v89 = vunpack.c.l.b16 %v49
    %v90 = vunpack.c.h.b16 %v49
    %v91 = vunpack.c.l.b16 %v50
    %v92 = vunpack.c.h.b16 %v50
    %v93 = vunpack.c.l.b16 %v51
    %v94 = vunpack.c.h.b16 %v51
    %v95 = vunpack.c.l.b16 %v52
    %v96 = vunpack.c.h.b16 %v52
    %v97 = vunpack.c.l.b16 %v53
    %v98 = vunpack.c.h.b16 %v53
    %v99 = vunpack.c.l.b16 %v54
    %v100 = vunpack.c.h.b16 %v54
    %v101 = vunpack.c.l.b16 %v55
    %v102 = vunpack.c.h.b16 %v55
    %v103 = vunpack.c.l.b16 %v56
    %v104 = vunpack.c.h.b16 %v56
    %v105 = vpack.c.b16 %v75, %v73
    %v106 = vpack.c.b16 %v76, %v74
    %v107 = vpack.c.b16 %v79, %v77
    %v108 = vpack.c.b16 %v80, %v78
    %v109 = vpack.c.b16 %v83, %v81
    %v110 = vpack.c.b16 %v84, %v82
    %v111 = vpack.c.b16 %v87, %v85
    %v112 = vpack.c.b16 %v88, %v86
    %v113 = vpack.c.b16 %v91, %v89
    %v114 = vpack.c.b16 %v92, %v90
    %v115 = vpack.c.b16 %v95, %v93
    %v116 = vpack.c.b16 %v96, %v94
    %v117 = vpack.c.b16 %v99, %v97
    %v118 = vpack.c.b16 %v100, %v98
    %v119 = vpack.c.b16 %v103, %v101
    %v120 = vpack.c.b16 %v104, %v102
    %137 = vmatprep.subr.bf16.mxu0 %v106
    %138 = vmatpush1.bf16.msra.mxu0 %v105
    %139 = vmatprep.subr.bf16.mxu0 %v108
    %140 = vmatpush1.bf16.msra.mxu0 %v107
    %141 = vmatprep.subr.bf16.mxu0 %v110
    %142 = vmatpush1.bf16.msra.mxu0 %v109
    %143 = vmatprep.subr.bf16.mxu0 %v112
    %144 = vmatpush1.bf16.msra.mxu0 %v111
    %145 = vmatprep.subr.bf16.mxu0 %v114
    %146 = vmatpush1.bf16.msra.mxu0 %v113
    %147 = vmatprep.subr.bf16.mxu0 %v116
    %148 = vmatpush1.bf16.msra.mxu0 %v115
    %149 = vmatprep.subr.bf16.mxu0 %v118
    %150 = vmatpush1.bf16.msra.mxu0 %v117
    %151 = vmatprep.subr.bf16.mxu0 %v120
    %152 = vmatpush1.bf16.msra.mxu0 %v119
    %153 = vmatprep.subr.bf16.mxu0 0
    %154 = vmatpush1.bf16.msra.mxu0 0
    %155 = vmatprep.subr.bf16.mxu0 0
    %156 = vmatpush1.bf16.msra.mxu0 0
    %157 = vmatprep.subr.bf16.mxu0 0
    %158 = vmatpush1.bf16.msra.mxu0 0
    %159 = vmatprep.subr.bf16.mxu0 0
    %160 = vmatpush1.bf16.msra.mxu0 0
    %161 = vmatprep.subr.bf16.mxu0 0
    %162 = vmatpush1.bf16.msra.mxu0 0
    %163 = vmatprep.subr.bf16.mxu0 0
    %164 = vmatpush1.bf16.msra.mxu0 0
    %165 = vmatprep.subr.bf16.mxu0 0
    %166 = vmatpush1.bf16.msra.mxu0 0
    %167 = vmatprep.subr.bf16.mxu0 0
    %168 = vmatpush1.bf16.msra.mxu0 0
    %169 = vmatprep.mubr.bf16.mxu0 0
    %170 = vmatmul.mubr.bf16.gmra.mrb[0].mxu0 %v40
    %v171 = vpop.f32.mrb[0].mxu0
    %v172 = vadd.f32 0.0, %v171
    %v173 = vpop.f32.mrb[0].mxu0
    %v174 = vadd.f32 0.0, %v173
    %v175 = vpop.f32.mrb[0].mxu0
    %v176 = vadd.f32 0.0, %v175
    %v177 = vpop.f32.mrb[0].mxu0
    %v178 = vadd.f32 0.0, %v177
    %179 = vdwg.mxu0
    %v180 = vpack.c.bf16 %v176, %v172
    %181 = vmatprep.subr.bf16.mxu0 0
    %182 = vmatpush1.bf16.xpose.msra.mxu0 %v40
    %183 = vmatprep.subr.bf16.mxu0 0
    %184 = vmatpush1.bf16.xpose.msra.mxu0 0
    %185 = vmatprep.subr.bf16.mxu0 0
    %186 = vmatpush1.bf16.xpose.msra.mxu0 0
    %187 = vmatprep.subr.bf16.mxu0 0
    %188 = vmatpush1.bf16.xpose.msra.mxu0 0
    %189 = vmatprep.subr.bf16.mxu0 0
    %190 = vmatpush1.bf16.xpose.msra.mxu0 0
    %191 = vmatprep.subr.bf16.mxu0 0
    %192 = vmatpush1.bf16.xpose.msra.mxu0 0
    %193 = vmatprep.subr.bf16.mxu0 0
    %194 = vmatpush1.bf16.xpose.msra.mxu0 0
    %195 = vmatprep.subr.bf16.mxu0 0
    %196 = vmatpush1.bf16.xpose.msra.mxu0 0
    %197 = vmatprep.subr.bf16.mxu0 0
    %198 = vmatpush1.bf16.xpose.msra.mxu0 0
    %199 = vmatprep.subr.bf16.mxu0 0
    %200 = vmatpush1.bf16.xpose.msra.mxu0 0
    %201 = vmatprep.subr.bf16.mxu0 0
    %202 = vmatpush1.bf16.xpose.msra.mxu0 0
    %203 = vmatprep.subr.bf16.mxu0 0
    %204 = vmatpush1.bf16.xpose.msra.mxu0 0
    %205 = vmatprep.subr.bf16.mxu0 0
    %206 = vmatpush1.bf16.xpose.msra.mxu0 0
    %207 = vmatprep.subr.bf16.mxu0 0
    %208 = vmatpush1.bf16.xpose.msra.mxu0 0
    %209 = vmatprep.subr.bf16.mxu0 0
    %210 = vmatpush1.bf16.xpose.msra.mxu0 0
    %211 = vmatprep.subr.bf16.mxu0 0
    %212 = vmatpush1.bf16.xpose.msra.mxu0 0
    %213 = vmatprep.mubr.bf16.mxu0 0
    %214 = vmatmul.mubr.bf16.gmra.mrb[0].mxu0 %v180
    %v215 = vpop.f32.mrb[0].mxu0
    %v216 = vadd.f32 0.0, %v215
    %v217 = vpop.f32.mrb[0].mxu0
    %v218 = vpop.f32.mrb[0].mxu0
    %v219 = vadd.f32 0.0, %v218
    %v220 = vpop.f32.mrb[0].mxu0
    %221 = vdwg.mxu0
    %v222 = vld [vmem:[%s4] sm:$0x3]
    %v223 = vld [vmem:[%s4 + $0x2] sm:$0x3]
    %v224 = vunpack.c.0.s8 %v222
    %v225 = vunpack.c.0.s8 %v223
    %v226 = vcvt.s32.f32 %v224
    %v227 = vcvt.s32.f32 %v225
    %v228 = vmul.f32 %v216, %v226
    %v229 = vmul.f32 %v219, %v227
    %v230 = vpack.c.bf16 %v229, %v228
    %v231 = vpack.c.bf16 %v178, %v174
    %vm232 = vcmask 130048
    %v234 = vsel %vm232, %v230, 0
    %236 = vmatprep.subr.bf16.mxu0 0
    %237 = vmatpush1.bf16.msra.mxu0 %v231
    %238 = vmatprep.subr.bf16.mxu0 0
    %239 = vmatpush1.bf16.msra.mxu0 0
    %240 = vmatprep.subr.bf16.mxu0 0
    %241 = vmatpush1.bf16.msra.mxu0 0
    %242 = vmatprep.subr.bf16.mxu0 0
    %243 = vmatpush1.bf16.msra.mxu0 0
    %244 = vmatprep.subr.bf16.mxu0 0
    %245 = vmatpush1.bf16.msra.mxu0 0
    %246 = vmatprep.subr.bf16.mxu0 0
    %247 = vmatpush1.bf16.msra.mxu0 0
    %248 = vmatprep.subr.bf16.mxu0 0
    %249 = vmatpush1.bf16.msra.mxu0 0
    %250 = vmatprep.subr.bf16.mxu0 0
    %251 = vmatpush1.bf16.msra.mxu0 0
    %252 = vmatprep.subr.bf16.mxu0 0
    %253 = vmatpush1.bf16.msra.mxu0 0
    %254 = vmatprep.subr.bf16.mxu0 0
    %255 = vmatpush1.bf16.msra.mxu0 0
    %256 = vmatprep.subr.bf16.mxu0 0
    %257 = vmatpush1.bf16.msra.mxu0 0
    %258 = vmatprep.subr.bf16.mxu0 0
    %259 = vmatpush1.bf16.msra.mxu0 0
    %260 = vmatprep.subr.bf16.mxu0 0
    %261 = vmatpush1.bf16.msra.mxu0 0
    %262 = vmatprep.subr.bf16.mxu0 0
    %263 = vmatpush1.bf16.msra.mxu0 0
    %264 = vmatprep.subr.bf16.mxu0 0
    %265 = vmatpush1.bf16.msra.mxu0 0
    %266 = vmatprep.subr.bf16.mxu0 0
    %267 = vmatpush1.bf16.msra.mxu0 0
    %268 = vmatprep.mubr.bf16.mxu0 0
    %269 = vmatmul.mubr.bf16.gmra.mrb[0].mxu0 %v234
    %v270 = vpop.f32.mrb[0].mxu0
    %v271 = vadd.f32 0.0, %v270
    %v272 = vpop.f32.mrb[0].mxu0
    %v273 = vpop.f32.mrb[0].mxu0
    %v274 = vadd.f32 0.0, %v273
    %v275 = vpop.f32.mrb[0].mxu0
    %276 = vdwg.mxu0
    %v277 = vmax.f32 %v271, 0.0
    %v278 = vmax.f32 %v274, 0.0
    %v279 = vpack.c.bf16 %v278, %v277
    %v280 = vld [vmem:[#allocation2] sm:$0xf]
    %v281 = vld [vmem:[#allocation2 + $0x4] sm:$0xf]
    %v282 = vld [vmem:[#allocation2 + $0x8] sm:$0xf]
    %v283 = vld [vmem:[#allocation2 + $0xc] sm:$0xf]
    %v284 = vld [vmem:[#allocation2 + $0x10] sm:$0xf]
    %v285 = vld [vmem:[#allocation2 + $0x14] sm:$0xf]
    %v286 = vld [vmem:[#allocation2 + $0x18] sm:$0xf]
    %v287 = vld [vmem:[#allocation2 + $0x1c] sm:$0xf]
    %v288 = vld [vmem:[#allocation2 + $0x20] sm:$0xf]
    %v289 = vld [vmem:[#allocation2 + $0x24] sm:$0xf]
    %v290 = vld [vmem:[#allocation2 + $0x28] sm:$0xf]
    %v291 = vld [vmem:[#allocation2 + $0x2c] sm:$0xf]
    %v292 = vld [vmem:[#allocation2 + $0x30] sm:$0xf]
    %v293 = vld [vmem:[#allocation2 + $0x34] sm:$0xf]
    %v294 = vld [vmem:[#allocation2 + $0x38] sm:$0xf]
    %v295 = vld [vmem:[#allocation2 + $0x3c] sm:$0xf]
    %v296 = vld [vmem:[%s3] sm:$0x1]
    %v298 = vlaneseq
    %v299 = vshrl.u32 %v298, 7
    %v300 = vsub.s32 0, %v299
    %v301 = vrot.slane %v296, %v300
    %v319 = vunpack.c.l.b16 %v280
    %v320 = vunpack.c.l.b16 %v281
    %v321 = vunpack.c.l.b16 %v282
    %v322 = vunpack.c.l.b16 %v283
    %v323 = vunpack.c.l.b16 %v284
    %v324 = vunpack.c.l.b16 %v285
    %v325 = vunpack.c.l.b16 %v286
    %v326 = vunpack.c.l.b16 %v287
    %v327 = vunpack.c.l.b16 %v288
    %v328 = vunpack.c.l.b16 %v289
    %v329 = vunpack.c.l.b16 %v290
    %v330 = vunpack.c.l.b16 %v291
    %v331 = vunpack.c.l.b16 %v292
    %v332 = vunpack.c.l.b16 %v293
    %v333 = vunpack.c.l.b16 %v294
    %v334 = vunpack.c.l.b16 %v295
    %v335 = vpack.c.b16 %v320, %v319
    %v336 = vpack.c.b16 %v322, %v321
    %v337 = vpack.c.b16 %v324, %v323
    %v338 = vpack.c.b16 %v326, %v325
    %v339 = vpack.c.b16 %v328, %v327
    %v340 = vpack.c.b16 %v330, %v329
    %v341 = vpack.c.b16 %v332, %v331
    %v342 = vpack.c.b16 %v334, %v333
    %351 = vmatprep.subr.bf16.mxu0 0
    %352 = vmatpush1.bf16.msra.mxu0 %v335
    %353 = vmatprep.subr.bf16.mxu0 0
    %354 = vmatpush1.bf16.msra.mxu0 %v336
    %355 = vmatprep.subr.bf16.mxu0 0
    %356 = vmatpush1.bf16.msra.mxu0 %v337
    %357 = vmatprep.subr.bf16.mxu0 0
    %358 = vmatpush1.bf16.msra.mxu0 %v338
    %359 = vmatprep.subr.bf16.mxu0 0
    %360 = vmatpush1.bf16.msra.mxu0 %v339
    %361 = vmatprep.subr.bf16.mxu0 0
    %362 = vmatpush1.bf16.msra.mxu0 %v340
    %363 = vmatprep.subr.bf16.mxu0 0
    %364 = vmatpush1.bf16.msra.mxu0 %v341
    %365 = vmatprep.subr.bf16.mxu0 0
    %366 = vmatpush1.bf16.msra.mxu0 %v342
    %367 = vmatprep.subr.bf16.mxu0 0
    %368 = vmatpush1.bf16.msra.mxu0 0
    %369 = vmatprep.subr.bf16.mxu0 0
    %370 = vmatpush1.bf16.msra.mxu0 0
    %371 = vmatprep.subr.bf16.mxu0 0
    %372 = vmatpush1.bf16.msra.mxu0 0
    %373 = vmatprep.subr.bf16.mxu0 0
    %374 = vmatpush1.bf16.msra.mxu0 0
    %375 = vmatprep.subr.bf16.mxu0 0
    %376 = vmatpush1.bf16.msra.mxu0 0
    %377 = vmatprep.subr.bf16.mxu0 0
    %378 = vmatpush1.bf16.msra.mxu0 0
    %379 = vmatprep.subr.bf16.mxu0 0
    %380 = vmatpush1.bf16.msra.mxu0 0
    %381 = vmatprep.subr.bf16.mxu0 0
    %382 = vmatpush1.bf16.msra.mxu0 0
    %383 = vmatprep.mubr.bf16.mxu0 0
    %384 = vmatmul.mubr.bf16.gmra.mrb[0].mxu0 %v279
    %v385 = vpop.f32.mrb[0].mxu0
    %v386 = vadd.f32 %v301, %v385
    %v387 = vpop.f32.mrb[0].mxu0
    %v388 = vpop.f32.mrb[0].mxu0
    %v389 = vadd.f32 %v301, %v388
    %v390 = vpop.f32.mrb[0].mxu0
    %391 = vdwg.mxu0
    %392 = vst [vmem:[%s5] sm:$0xff] %v386
    %393 = vst [vmem:[%s5 + $0x8] sm:$0xff] %v389
    %v394 = vlaneseq
    %v395 = vand.u32 %v394, 127
    %vm396 = vcmp.lt.s32.totalorder %v395, 8
    %v397 = vsel %vm396, %v386, -1e+30
    %v398 = vsel %vm396, %v389, -1e+30
    %399 = vmax.xlane.f32.xlu0 %v397
    %v400 = vpop.xlane.xlu0 %399
    %401 = vmax.xlane.f32.xlu0 %v398
    %v402 = vpop.xlane.xlu0 %401
    %v403 = vsub.f32 %v397, %v400
    %v404 = vsub.f32 %v398, %v402
    %v405 = vmul.f32 %v403, 1.442695
    %v406 = vpow.pop %v405
    %v407 = vmul.f32 %v404, 1.442695
    %v408 = vpow.pop %v407
    %409 = vadd.xlane.f32.xlu0 %v406
    %v410 = vpop.xlane.xlu0 %409
    %411 = vadd.xlane.f32.xlu0 %v408
    %v412 = vpop.xlane.xlu0 %411
    %v413 = vlog2.pop %v410
    %v414 = vmul.f32 %v413, 0.6931472
    %v415 = vlog2.pop %v412
    %v416 = vmul.f32 %v415, 0.6931472
    %v417 = vsub.f32 %v403, %v414
    %v418 = vsub.f32 %v404, %v416
    %v419 = vmul.f32 %v38, %v417
    %v420 = vmul.f32 %v39, %v418
    %v421 = vsel %vm396, %v419, 0.0
    %v422 = vsel %vm396, %v420, 0.0
    %423 = vadd.xlane.f32.xlu0 %v421
    %v424 = vpop.xlane.xlu0 %423
    %425 = vadd.xlane.f32.xlu0 %v422
    %v426 = vpop.xlane.xlu0 %425
    %v427 = vadd.f32 %v424, %v426
    %v428 = vrot.slane %v427, 4
    %v429 = vadd.f32 %v427, %v428
    %v430 = vrot.slane %v429, 2
    %v431 = vadd.f32 %v429, %v430
    %v432 = vrot.slane %v431, 1
    %v433 = vadd.f32 %v431, %v432
    %v434 = vrcp.pop 16.0
    %v435 = vmul.f32 %v433, %v434
    %v436 = vsub.f32 0.0, %v435
    %vm437 = vcmask 0
    %438 = vst.msk [vmem:[#allocation5] sm:$0x1] %vm437, %v436
    // Predicated region
    $region26: #{gat_forward.1} parent=1 // pred_check
      _
    $region27: #{gat_forward.1} parent=1 // pred_check_branch
      %440 = sbr.rel (0) target = $region29
    $region28: #{gat_forward.1} parent=1 // pred_region
      _
    $region29: #{gat_forward.1} parent=1 // pred_fallthru
      _
    // Predicated region
    $region30: #{gat_forward.1} parent=1 // pred_check
      _
    $region31: #{gat_forward.1} parent=1 // pred_check_branch
      %442 = sbr.rel (0) target = $region33
    $region32: #{gat_forward.1} parent=1 // pred_region
      %s444 = ssub.s32 16, 16
      %445 = vsyncadd [#allocation4], %s444
      %s447 = sshll.u32 [#allocation5], 4
      %s448 = int_to_ptr.vmem [resolvable:$true] %s447
      %450 = dma.vmem_to_hbm [thread:$0]  %s448, 16, %s6, [#allocation4]
    $region33: #{gat_forward.1} parent=1 // pred_fallthru
      _
    // Predicated region
    $region34: #{gat_forward.1} parent=1 // pred_check
      _
    $region35: #{gat_forward.1} parent=1 // pred_check_branch
      %452 = sbr.rel (0) target = $region37
    $region36: #{gat_forward.1} parent=1 // pred_region
      _
    $region37: #{gat_forward.1} parent=1 // pred_fallthru
      _
    // Predicated region
    $region38: #{gat_forward.1} parent=1 // pred_check
      _
    $region39: #{gat_forward.1} parent=1 // pred_check_branch
      %454 = sbr.rel (0) target = $region41
    $region40: #{gat_forward.1} parent=1 // pred_region
      %455 = dma.done [#allocation4], 16
    $region41: #{gat_forward.1} parent=1 // pred_fallthru
      _
    %456 = vsyncpa [#allocation3], 1
    %457 = vsyncpa [#allocation4], 1

</llo_original>
